<compile_context>
chip_gen: v7x
topology: tpu7x:2x2x1
jax: 0.10.0
libtpu: 0.0.40
codegen_flags: <defaults>
</compile_context>

<pallas_src>
import functools

import jax
import jax.numpy as jnp
from jax.experimental import pallas as pl
from jax.experimental.pallas import tpu as pltpu

EPS = 1e-6
LANES = 128
MAX_TILE_ROWS = 2048      # (2048,128) f32 block = 1 MiB
NUM_CORE_SPLITS = 2       # v7x has 2 TensorCores; serial (harmless) elsewhere


# ---------------------------------------------------------------------------
# Pallas kernel: per-core partial reductions of the log-error stream.
# ---------------------------------------------------------------------------
def _silog_partial_kernel(*refs, total, tile_rows, inner_steps, has_mask):
    if has_mask:
        x_ref, t_ref, m_ref, o_ref, sum_ref, sq_ref, cnt_ref = refs
    else:
        x_ref, t_ref, o_ref, sum_ref, sq_ref = refs
        m_ref = cnt_ref = None

    c = pl.program_id(0)   # core-split axis ("parallel")
    j = pl.program_id(1)   # streaming/reduction axis ("arbitrary")

    @pl.when(j == 0)
    def _():
        sum_ref[...] = jnp.zeros_like(sum_ref)
        sq_ref[...] = jnp.zeros_like(sq_ref)
        if has_mask:
            cnt_ref[...] = jnp.zeros_like(cnt_ref)

    x = x_ref[...].astype(jnp.float32)
    t = t_ref[...].astype(jnp.float32)

    # Global flat index of every element in this block; anything past the real
    # element count (lane padding, partial blocks, phantom clamped blocks) is
    # masked out and contributes zero.
    block_id = c * inner_steps + j
    base = block_id * (tile_rows * LANES)
    row_ids = jax.lax.broadcasted_iota(jnp.int32, (tile_rows, LANES), 0)
    lane_ids = jax.lax.broadcasted_iota(jnp.int32, (tile_rows, LANES), 1)
    valid = (base + row_ids * LANES + lane_ids) < total
    if has_mask:
        valid = jnp.logical_and(valid, m_ref[...] != 0)

    # Fused: 1 log + 1 divide instead of 2 logs (EUP insurance).
    log_err = jnp.log((x + EPS) / (t + EPS))
    log_err = jnp.where(valid, log_err, 0.0)

    # Vector accumulation (VPU only); no per-step cross-lane reductions.
    sum_ref[...] += log_err
    sq_ref[...] += log_err * log_err
    if has_mask:
        cnt_ref[...] += jnp.where(valid, 1.0, 0.0)

    @pl.when(j == inner_steps - 1)
    def _():
        s = jnp.sum(sum_ref[...])
        q = jnp.sum(sq_ref[...])
        lane = jax.lax.broadcasted_iota(jnp.int32, (1, 8, LANES), 2)
        vec = jnp.where(lane == 0, s, jnp.where(lane == 1, q, 0.0))
        if has_mask:
            n = jnp.sum(cnt_ref[...])
            vec = jnp.where(lane == 2, n, vec)
        o_ref[...] = vec


# ---------------------------------------------------------------------------
# Glue: bilinear align_corners=True resize (matches F.interpolate(...,
# mode='bilinear', align_corners=True)) — plain JAX, NCHW layout.
# ---------------------------------------------------------------------------
def _bilinear_align_corners(x, out_hw):
    N, C, Hi, Wi = x.shape
    Ho, Wo = out_hw
    if (Hi, Wi) == (Ho, Wo):
        return x

    def coords(out_len, in_len):
        if out_len == 1:
            return jnp.zeros((1,), jnp.float32)
        scale = (in_len - 1) / (out_len - 1)
        return jnp.arange(out_len, dtype=jnp.float32) * scale

    ys = coords(Ho, Hi)
    xs = coords(Wo, Wi)

    y0 = jnp.clip(jnp.floor(ys).astype(jnp.int32), 0, Hi - 1)
    y1 = jnp.clip(y0 + 1, 0, Hi - 1)
    wy = ys - y0.astype(jnp.float32)

    x0 = jnp.clip(jnp.floor(xs).astype(jnp.int32), 0, Wi - 1)
    x1 = jnp.clip(x0 + 1, 0, Wi - 1)
    wx = xs - x0.astype(jnp.float32)

    top = x[:, :, y0, :]
    bot = x[:, :, y1, :]
    rows = top * (1.0 - wy)[None, None, :, None] + bot * wy[None, None, :, None]

    left = rows[:, :, :, x0]
    right = rows[:, :, :, x1]
    out = left * (1.0 - wx)[None, None, None, :] + right * wx[None, None, None, :]
    return out


# ---------------------------------------------------------------------------
# Wrapper: SILog.forward equivalent.
# ---------------------------------------------------------------------------
@functools.partial(jax.jit, static_argnames=("interpolate",))
def silog_loss(inp, target, mask=None, interpolate=True):
    if interpolate:
        inp = _bilinear_align_corners(inp, target.shape[-2:])

    has_mask = mask is not None

    # Native dtype (no wrapper-side f32 cast); the kernel casts in VMEM.
    x_flat = inp.reshape(-1)
    t_flat = target.reshape(-1)
    total = int(t_flat.shape[0])

    # Tiny lane pad (<128 elems) only when needed; padded tail is masked
    # in-kernel via the element-count iota, so fill values are irrelevant.
    pad = (-total) % LANES
    if pad:
        x_flat = jnp.pad(x_flat, (0, pad))
        t_flat = jnp.pad(t_flat, (0, pad))

    rows = (total + pad) // LANES
    operands = [x_flat.reshape(rows, LANES), t_flat.reshape(rows, LANES)]
    if has_mask:
        m_flat = mask.reshape(-1).astype(jnp.int8)   # 1-byte mask stream
        if pad:
            m_flat = jnp.pad(m_flat, (0, pad))
        operands.append(m_flat.reshape(rows, LANES))

    tile_rows = min(MAX_TILE_ROWS, rows)              # full rows or mult. of 8
    num_blocks = (rows + tile_rows - 1) // tile_rows
    n_cores = min(NUM_CORE_SPLITS, num_blocks)
    inner_steps = (num_blocks + n_cores - 1) // n_cores

    def in_map(c, j):
        # Clamp so trailing "phantom" blocks stay in-bounds; their contribution
        # is zeroed by the in-kernel validity mask.
        return (jnp.minimum(c * inner_steps + j, num_blocks - 1), 0)

    in_spec = pl.BlockSpec((tile_rows, LANES), in_map)
    in_specs = [in_spec] * len(operands)
    out_spec = pl.BlockSpec((1, 8, LANES), lambda c, j: (c, 0, 0))

    scratch = [pltpu.VMEM((tile_rows, LANES), jnp.float32)] * (3 if has_mask else 2)

    kernel = functools.partial(
        _silog_partial_kernel, total=total, tile_rows=tile_rows,
        inner_steps=inner_steps, has_mask=has_mask)

    partials = pl.pallas_call(
        kernel,
        out_shape=jax.ShapeDtypeStruct((n_cores, 8, LANES), jnp.float32),
        grid_spec=pltpu.PrefetchScalarGridSpec(
            num_scalar_prefetch=0,
            grid=(n_cores, inner_steps),
            in_specs=in_specs,
            out_specs=out_spec,
            scratch_shapes=scratch,
        ),
        compiler_params=pltpu.CompilerParams(
            dimension_semantics=("parallel", "arbitrary")),
    )(*operands)

    # Tiny scalar combine in plain JAX (per-core partials -> final loss).
    s = jnp.sum(partials[:, 0, 0])
    q = jnp.sum(partials[:, 0, 1])
    if has_mask:
        n = jnp.sum(partials[:, 0, 2])
    else:
        n = jnp.float32(total)

    mean = s / n
    mean_sq_log_error = mean * mean
    # torch.var default: unbiased (divide by n-1).  NOTE: n <= 1 gives Inf/NaN,
    # matching the PyTorch reference behavior.
    scale_inv = (q - n * mean_sq_log_error) / (n - 1.0)
    dg = scale_inv + 0.15 * mean_sq_log_error
    return jnp.sqrt(dg + EPS)


class SILogPallas:
    """JAX/Pallas equivalent of the PyTorch SILog module."""

    def __init__(self, weight: float):
        self.name = "SILog"
        self.weight = weight  # kept for parity; unused in forward (as in torch)
        self.eps = EPS

    def __call__(self, inp, target, mask=None, interpolate=True):
        return silog_loss(inp, target, mask=mask, interpolate=interpolate)


# ---------------------------------------------------------------------------
# Pure-JAX reference (matches the torch formulation) for sanity checking.
# ---------------------------------------------------------------------------
def _silog_ref(inp, target, mask=None, interpolate=True):
    if interpolate:
        inp = _bilinear_align_corners(inp, target.shape[-2:])
    x = inp.reshape(-1).astype(jnp.float32)
    t = target.reshape(-1).astype(jnp.float32)
    if mask is not None:
        m = mask.reshape(-1)
        x = x[m]
        t = t[m]
    le = jnp.log(x + EPS) - jnp.log(t + EPS)
    mean = jnp.mean(le)
    msq = mean * mean
    var = jnp.var(le, ddof=1)  # torch.var default is unbiased
    dg = var + 0.15 * msq
    return jnp.sqrt(dg + EPS)


if __name__ == "__main__":
    key = jax.random.PRNGKey(0)
    k1, k2 = jax.random.split(key)

    # depth-like positive inputs; predicted map at lower resolution (NCHW)
    inp = jax.random.uniform(k1, (2, 3, 16, 16), jnp.float32, 0.5, 2.0)
    target = jax.random.uniform(k2, (2, 3, 32, 32), jnp.float32, 0.5, 2.0)

    loss_mod = SILogPallas(weight=1.0)

    # mask=None fast path (2 input streams, no mask stream)
    out = loss_mod(inp, target, mask=None, interpolate=True)
    out = jax.block_until_ready(out)
    ref = _silog_ref(inp, target, mask=None, interpolate=True)
    assert jnp.allclose(out, ref, rtol=1e-4, atol=1e-6), (out, ref)

    # explicit mask path (mask streamed as int8)
    mask = target > 1.25
    out_m = loss_mod(inp, target, mask=mask, interpolate=True)
    out_m = jax.block_until_ready(out_m)
    ref_m = _silog_ref(inp, target, mask=mask, interpolate=True)
    assert jnp.allclose(out_m, ref_m, rtol=1e-4, atol=1e-6), (out_m, ref_m)

    print("KERNEL_OK")
</pallas_src>

<mosaic_0001>
module attributes {stable_mosaic.version = 11 : i64} {
  func.func @_silog_partial_kernel(%arg0: i32, %arg1: i32, %arg2: memref<48x128xf32, #tpu.memory_space<vmem>>, %arg3: memref<48x128xf32, #tpu.memory_space<vmem>>, %arg4: memref<1x8x128xf32, #tpu.memory_space<vmem>>, %arg5: memref<48x128xf32, #tpu.memory_space<vmem>>, %arg6: memref<48x128xf32, #tpu.memory_space<vmem>>) attributes {dimension_semantics = [#tpu.dimension_semantics<parallel>, #tpu.dimension_semantics<arbitrary>], iteration_bounds = array<i64: 1, 1>, scalar_prefetch = 0 : i64, scratch_operands = 2 : i64, tpu.core_type = #tpu.core_type<tc>, window_params = [{transform_indices = @transform_0, window_bounds = array<i64: 48, 128>}, {transform_indices = @transform_1, window_bounds = array<i64: 48, 128>}, {transform_indices = @transform_2, window_bounds = array<i64: 1, 8, 128>}]} {
    %c0_i32 = arith.constant 0 : i32
    %0 = arith.cmpi eq, %arg1, %c0_i32 : i32
    %1 = arith.extui %0 : i1 to i32
    %c0_i32_0 = arith.constant 0 : i32
    %2 = arith.cmpi ne, %1, %c0_i32_0 : i32
    scf.if %2 {
      %cst_17 = arith.constant 0.000000e+00 : f32
      %35 = vector.broadcast %cst_17 : f32 to vector<48x128xf32>
      %c0_18 = arith.constant 0 : index
      %c0_19 = arith.constant 0 : index
      %36 = vector.load %arg5[%c0_18, %c0_19] : memref<48x128xf32, #tpu.memory_space<vmem>>, vector<48x128xf32>
      tpu.vector_store %arg5[%c0_18, %c0_19], %35 {strides = array<i32>} : memref<48x128xf32, #tpu.memory_space<vmem>>, vector<48x128xf32>,
      %cst_20 = arith.constant 0.000000e+00 : f32
      %37 = vector.broadcast %cst_20 : f32 to vector<48x128xf32>
      %c0_21 = arith.constant 0 : index
      %c0_22 = arith.constant 0 : index
      %38 = vector.load %arg6[%c0_21, %c0_22] : memref<48x128xf32, #tpu.memory_space<vmem>>, vector<48x128xf32>
      tpu.vector_store %arg6[%c0_21, %c0_22], %37 {strides = array<i32>} : memref<48x128xf32, #tpu.memory_space<vmem>>, vector<48x128xf32>,
    } else {
    }
    %c0 = arith.constant 0 : index
    %c0_1 = arith.constant 0 : index
    %3 = vector.load %arg2[%c0, %c0_1] : memref<48x128xf32, #tpu.memory_space<vmem>>, vector<48x128xf32>
    %c0_2 = arith.constant 0 : index
    %c0_3 = arith.constant 0 : index
    %4 = vector.load %arg3[%c0_2, %c0_3] : memref<48x128xf32, #tpu.memory_space<vmem>>, vector<48x128xf32>
    %c1_i32 = arith.constant 1 : i32
    %5 = arith.muli %arg0, %c1_i32 : i32
    %6 = arith.addi %5, %arg1 : i32
    %c6144_i32 = arith.constant 6144 : i32
    %7 = arith.muli %6, %c6144_i32 : i32
    %8 = tpu.iota {dimensions = array<i32: 0>} : vector<48x128xi32>
    %9 = tpu.iota {dimensions = array<i32: 1>} : vector<48x128xi32>
    %c128_i32 = arith.constant 128 : i32
    %10 = vector.broadcast %c128_i32 : i32 to vector<48x128xi32>
    %11 = arith.muli %8, %10 : vector<48x128xi32>
    %12 = vector.broadcast %7 : i32 to vector<48x128xi32>
    %13 = arith.addi %12, %11 : vector<48x128xi32>
    %14 = arith.addi %13, %9 : vector<48x128xi32>
    %c6144_i32_4 = arith.constant 6144 : i32
    %15 = vector.broadcast %c6144_i32_4 : i32 to vector<48x128xi32>
    %16 = arith.cmpi slt, %14, %15 : vector<48x128xi32>
    %cst = arith.constant 9.99999997E-7 : f32
    %17 = vector.broadcast %cst : f32 to vector<48x128xf32>
    %18 = arith.addf %3, %17 : vector<48x128xf32>
    %cst_5 = arith.constant 9.99999997E-7 : f32
    %19 = vector.broadcast %cst_5 : f32 to vector<48x128xf32>
    %20 = arith.addf %4, %19 : vector<48x128xf32>
    %21 = arith.divf %18, %20 : vector<48x128xf32>
    %22 = math.log %21 : vector<48x128xf32>
    %cst_6 = arith.constant 0.000000e+00 : f32
    %23 = vector.broadcast %cst_6 : f32 to vector<48x128xf32>
    %24 = arith.select %16, %22, %23 : vector<48x128xi1>, vector<48x128xf32>
    %c0_7 = arith.constant 0 : index
    %c0_8 = arith.constant 0 : index
    %25 = vector.load %arg5[%c0_7, %c0_8] : memref<48x128xf32, #tpu.memory_space<vmem>>, vector<48x128xf32>
    %26 = arith.addf %25, %24 : vector<48x128xf32>
    %c0_9 = arith.constant 0 : index
    %c0_10 = arith.constant 0 : index
    %27 = vector.load %arg5[%c0_9, %c0_10] : memref<48x128xf32, #tpu.memory_space<vmem>>, vector<48x128xf32>
    tpu.vector_store %arg5[%c0_9, %c0_10], %26 {strides = array<i32>} : memref<48x128xf32, #tpu.memory_space<vmem>>, vector<48x128xf32>,
    %c0_11 = arith.constant 0 : index
    %c0_12 = arith.constant 0 : index
    %28 = vector.load %arg6[%c0_11, %c0_12] : memref<48x128xf32, #tpu.memory_space<vmem>>, vector<48x128xf32>
    %29 = arith.mulf %24, %24 : vector<48x128xf32>
    %30 = arith.addf %28, %29 : vector<48x128xf32>
    %c0_13 = arith.constant 0 : index
    %c0_14 = arith.constant 0 : index
    %31 = vector.load %arg6[%c0_13, %c0_14] : memref<48x128xf32, #tpu.memory_space<vmem>>, vector<48x128xf32>
    tpu.vector_store %arg6[%c0_13, %c0_14], %30 {strides = array<i32>} : memref<48x128xf32, #tpu.memory_space<vmem>>, vector<48x128xf32>,
    %c0_i32_15 = arith.constant 0 : i32
    %32 = arith.cmpi eq, %arg1, %c0_i32_15 : i32
    %33 = arith.extui %32 : i1 to i32
    %c0_i32_16 = arith.constant 0 : i32
    %34 = arith.cmpi ne, %33, %c0_i32_16 : i32
    scf.if %34 {
      %c0_17 = arith.constant 0 : index
      %c0_18 = arith.constant 0 : index
      %35 = vector.load %arg5[%c0_17, %c0_18] : memref<48x128xf32, #tpu.memory_space<vmem>>, vector<48x128xf32>
      %36 = vector.shape_cast %35 : vector<48x128xf32> to vector<1x48x128xf32>
      %cst_19 = arith.constant dense<0.000000e+00> : vector<1xf32>
      %37 = vector.multi_reduction <add>, %36, %cst_19 [1, 2] : vector<1x48x128xf32> to vector<1xf32>
      %38 = vector.shape_cast %37 : vector<1xf32> to vector<1x1x1xf32>
      %39 = vector.extract %38[0, 0, 0] : f32 from vector<1x1x1xf32>
      %c0_20 = arith.constant 0 : index
      %c0_21 = arith.constant 0 : index
      %40 = vector.load %arg6[%c0_20, %c0_21] : memref<48x128xf32, #tpu.memory_space<vmem>>, vector<48x128xf32>
      %41 = vector.shape_cast %40 : vector<48x128xf32> to vector<1x48x128xf32>
      %cst_22 = arith.constant dense<0.000000e+00> : vector<1xf32>
      %42 = vector.multi_reduction <add>, %41, %cst_22 [1, 2] : vector<1x48x128xf32> to vector<1xf32>
      %43 = vector.shape_cast %42 : vector<1xf32> to vector<1x1x1xf32>
      %44 = vector.extract %43[0, 0, 0] : f32 from vector<1x1x1xf32>
      %45 = tpu.iota {dimensions = array<i32: 2>} : vector<1x8x128xi32>
      %c0_i32_23 = arith.constant 0 : i32
      %46 = vector.broadcast %c0_i32_23 : i32 to vector<1x8x128xi32>
      %47 = arith.cmpi eq, %45, %46 : vector<1x8x128xi32>
      %c1_i32_24 = arith.constant 1 : i32
      %48 = vector.broadcast %c1_i32_24 : i32 to vector<1x8x128xi32>
      %49 = arith.cmpi eq, %45, %48 : vector<1x8x128xi32>
      %cst_25 = arith.constant 0.000000e+00 : f32
      %50 = vector.broadcast %44 : f32 to vector<1x8x128xf32>
      %51 = vector.broadcast %cst_25 : f32 to vector<1x8x128xf32>
      %52 = arith.select %49, %50, %51 : vector<1x8x128xi1>, vector<1x8x128xf32>
      %53 = vector.broadcast %39 : f32 to vector<1x8x128xf32>
      %54 = arith.select %47, %53, %52 : vector<1x8x128xi1>, vector<1x8x128xf32>
      %c0_26 = arith.constant 0 : index
      %c0_27 = arith.constant 0 : index
      %c0_28 = arith.constant 0 : index
      %55 = vector.load %arg4[%c0_26, %c0_27, %c0_28] : memref<1x8x128xf32, #tpu.memory_space<vmem>>, vector<1x8x128xf32>
      tpu.vector_store %arg4[%c0_26, %c0_27, %c0_28], %54 {strides = array<i32>} : memref<1x8x128xf32, #tpu.memory_space<vmem>>, vector<1x8x128xf32>,
    } else {
    }
    return
  }
  func.func @transform_0(%arg0: i32, %arg1: i32) -> (i32, i32) {
    %c1_i32 = arith.constant 1 : i32
    %0 = arith.muli %arg0, %c1_i32 : i32
    %1 = arith.addi %0, %arg1 : i32
    %c0_i32 = arith.constant 0 : i32
    %2 = arith.minsi %1, %c0_i32 : i32
    %c0_i32_0 = arith.constant 0 : i32
    %c0_i32_1 = arith.constant 0 : i32
    return %2, %c0_i32_0 : i32, i32
  }
  func.func @transform_1(%arg0: i32, %arg1: i32) -> (i32, i32) {
    %c1_i32 = arith.constant 1 : i32
    %0 = arith.muli %arg0, %c1_i32 : i32
    %1 = arith.addi %0, %arg1 : i32
    %c0_i32 = arith.constant 0 : i32
    %2 = arith.minsi %1, %c0_i32 : i32
    %c0_i32_0 = arith.constant 0 : i32
    %c0_i32_1 = arith.constant 0 : i32
    return %2, %c0_i32_0 : i32, i32
  }
  func.func @transform_2(%arg0: i32, %arg1: i32) -> (i32, i32, i32) {
    %c0_i32 = arith.constant 0 : i32
    %c0_i32_0 = arith.constant 0 : i32
    %c0_i32_1 = arith.constant 0 : i32
    return %arg0, %c0_i32, %c0_i32_0 : i32, i32, i32
  }
}

</mosaic_0001>

<llo_original>
// kernel: silog_loss.1
$region0: #{silog_loss.1}
  #allocation0 [shape = 'u32[]', space=smem, size = 0x4, offset = 0x4, fixed_abs, tag = 'smem constant byte address 0x4 - core index']
  #allocation1 [shape = 'u32[144,128]{1,0:T(1,128)}', space=vmem, size = 0x12000, scoped, tag = 'internal scratch']
  #allocation2 [shape = 'f32[48,128]{1,0:T(8,128)}', space=vmem, size = 0x6000, scoped, tag = 'scratch operand']
  #allocation3 [shape = 'f32[48,128]{1,0:T(8,128)}', space=vmem, size = 0x6000, scoped, tag = 'scratch operand']
  %s0 = inlined_call_operand.vmem [shape: f32[48,128], index: 0, kind: input, shape index: {}]
  %s1 = inlined_call_operand.vmem [shape: f32[48,128], index: 1, kind: input, shape index: {}]
  %s2 = inlined_call_operand.vmem [shape: f32[1,8,128], index: 2, kind: output, shape index: {}]
  %s3 = sld [smem:[#allocation0]]
  $region26: #{silog_loss.1} parent=0
    _
  %s5 = ssub.s32 1, %s3
  %s6 = scalar_select 0, %s5, %s3
  // Predicated region
  $region2: #{silog_loss.1} parent=0 // pred_check
    _
  $region3: #{silog_loss.1} parent=0 // pred_check_branch
    %8 = sbr.rel (0) target = $region5
  $region4: #{silog_loss.1} parent=0 // pred_region
    %s9 = sadd.s32 0, 0
    %p10 = scmp.lt.s32.totalorder %s9, 0
    %s11 = scalar_select %p10, %s9, 0
    %s12 = smul.u32 6, %s11
    %p13 = scmp.lt.s32.totalorder %s12, 5
    %s14 = scalar_select %p13, %s12, 5
    %s15 = smul.addr %s14, 8
    %s16 = scalar_lea.vmem %s0, %s15
    %s17 = sadd.s32 0, 0
    %p18 = scmp.lt.s32.totalorder %s17, 0
    %s19 = scalar_select %p18, %s17, 0
    %s20 = smul.u32 6, %s19
  $region5: #{silog_loss.1} parent=0 // pred_fallthru
    _
  // Predicated region
  $region6: #{silog_loss.1} parent=0 // pred_check
    _
  $region7: #{silog_loss.1} parent=0 // pred_check_branch
    %22 = sbr.rel (0) target = $region9
  $region8: #{silog_loss.1} parent=0 // pred_region
    %s23 = sadd.s32 0, 0
    %p24 = scmp.lt.s32.totalorder %s23, 0
    %s25 = scalar_select %p24, %s23, 0
    %s26 = smul.u32 6, %s25
    %p27 = scmp.lt.s32.totalorder %s26, 5
    %s28 = scalar_select %p27, %s26, 5
    %s29 = smul.addr %s28, 8
    %s30 = scalar_lea.vmem %s1, %s29
    %s31 = sadd.s32 0, 0
    %p32 = scmp.lt.s32.totalorder %s31, 0
    %s33 = scalar_select %p32, %s31, 0
    %s34 = smul.u32 6, %s33
  $region9: #{silog_loss.1} parent=0 // pred_fallthru
    _
  %s35 = sadd.s32 0, 0
  %p36 = scmp.lt.s32.totalorder %s35, 0
  %s37 = scalar_select %p36, %s35, 0
  %s38 = smul.u32 6, %s37
  %p39 = scmp.lt.s32.totalorder %s38, 5
  %s40 = scalar_select %p39, %s38, 5
  %s41 = smul.addr %s40, 8
  %s42 = scalar_lea.vmem %s0, %s41
  %s43 = sadd.s32 0, 0
  %p44 = scmp.lt.s32.totalorder %s43, 0
  %s45 = scalar_select %p44, %s43, 0
  %s46 = smul.u32 6, %s45
  %p47 = scmp.lt.s32.totalorder %s46, 5
  %s48 = scalar_select %p47, %s46, 5
  %s49 = smul.addr %s48, 8
  %s50 = scalar_lea.vmem %s1, %s49
  %s51 = sadd.s32 0, 0
  %p52 = scmp.lt.s32.totalorder %s51, 0
  %s53 = scalar_select %p52, %s51, 0
  %s54 = smul.u32 6, %s53
  %p55 = scmp.lt.s32.totalorder %s54, 5
  %s56 = scalar_select %p55, %s54, 5
  %s57 = smul.addr %s56, 8
  %s58 = scalar_lea.vmem %s0, %s57
  %s59 = sadd.s32 0, 0
  %p60 = scmp.lt.s32.totalorder %s59, 0
  %s61 = scalar_select %p60, %s59, 0
  %s62 = smul.u32 6, %s61
  %s63 = sadd.s32 0, 0
  %p64 = scmp.lt.s32.totalorder %s63, 0
  %s65 = scalar_select %p64, %s63, 0
  %s66 = smul.u32 6, %s65
  %p67 = scmp.lt.s32.totalorder %s66, 5
  %s68 = scalar_select %p67, %s66, 5
  %s69 = smul.addr %s68, 8
  %s70 = scalar_lea.vmem %s1, %s69
  %s71 = sadd.s32 0, 0
  %p72 = scmp.lt.s32.totalorder %s71, 0
  %s73 = scalar_select %p72, %s71, 0
  %s74 = smul.u32 6, %s73
  %p75 = scmp.eq.s32.totalorder 0, 0
  // Predicated region
  $region10: #{silog_loss.1} parent=0 // pred_check
    %p76 = pneg %p75
  $region11: #{silog_loss.1} parent=0 // pred_check_branch
    %78 = sbr.rel (%p76) target = $region13
  $region12: #{silog_loss.1} parent=0 // pred_region
    %79 = vst [vmem:[#allocation2] sm:$0xff] 0.0
    %80 = vst [vmem:[#allocation2 + $0x8] sm:$0xff] 0.0
    %81 = vst [vmem:[#allocation2 + $0x10] sm:$0xff] 0.0
    %82 = vst [vmem:[#allocation2 + $0x18] sm:$0xff] 0.0
    %83 = vst [vmem:[#allocation2 + $0x20] sm:$0xff] 0.0
    %84 = vst [vmem:[#allocation2 + $0x28] sm:$0xff] 0.0
    %85 = vst [vmem:[#allocation3] sm:$0xff] 0.0
    %86 = vst [vmem:[#allocation3 + $0x8] sm:$0xff] 0.0
    %87 = vst [vmem:[#allocation3 + $0x10] sm:$0xff] 0.0
    %88 = vst [vmem:[#allocation3 + $0x18] sm:$0xff] 0.0
    %89 = vst [vmem:[#allocation3 + $0x20] sm:$0xff] 0.0
    %90 = vst [vmem:[#allocation3 + $0x28] sm:$0xff] 0.0
  $region13: #{silog_loss.1} parent=0 // pred_fallthru
    _
  %v91 = vld [vmem:[%s58] sm:$0xff]
  %v92 = vld [vmem:[%s58 + $0x8] sm:$0xff]
  %v93 = vld [vmem:[%s58 + $0x10] sm:$0xff]
  %v94 = vld [vmem:[%s58 + $0x18] sm:$0xff]
  %v95 = vld [vmem:[%s58 + $0x20] sm:$0xff]
  %v96 = vld [vmem:[%s58 + $0x28] sm:$0xff]
  %v97 = vld [vmem:[%s70] sm:$0xff]
  %v98 = vld [vmem:[%s70 + $0x8] sm:$0xff]
  %v99 = vld [vmem:[%s70 + $0x10] sm:$0xff]
  %v100 = vld [vmem:[%s70 + $0x18] sm:$0xff]
  %v101 = vld [vmem:[%s70 + $0x20] sm:$0xff]
  %v102 = vld [vmem:[%s70 + $0x28] sm:$0xff]
  %s103 = sadd.s32 0, 0
  %s104 = smul.u32 %s103, 6144
  %v105 = vlaneseq
  %v106 = vshrl.u32 %v105, 7
  %v107 = vadd.s32 %v106, 8
  %v108 = vadd.s32 %v106, 16
  %v109 = vadd.s32 %v106, 24
  %v110 = vadd.s32 %v106, 32
  %v111 = vadd.s32 %v106, 40
  %v112 = vlaneseq
  %v113 = vand.u32 %v112, 127
  %v114 = vmul.u32 %v106, 128
  %v115 = vmul.u32 %v107, 128
  %v116 = vmul.u32 %v108, 128
  %v117 = vmul.u32 %v109, 128
  %v118 = vmul.u32 %v110, 128
  %v119 = vmul.u32 %v111, 128
  %v120 = vstv %s104
  %v121 = vadd.s32 %v120, %v114
  %v122 = vadd.s32 %v120, %v115
  %v123 = vadd.s32 %v120, %v116
  %v124 = vadd.s32 %v120, %v117
  %v125 = vadd.s32 %v120, %v118
  %v126 = vadd.s32 %v120, %v119
  %v127 = vadd.s32 %v121, %v113
  %v128 = vadd.s32 %v122, %v113
  %v129 = vadd.s32 %v123, %v113
  %v130 = vadd.s32 %v124, %v113
  %v131 = vadd.s32 %v125, %v113
  %v132 = vadd.s32 %v126, %v113
  %vm133 = vcmp.lt.s32.totalorder %v127, 6144
  %vm134 = vcmp.lt.s32.totalorder %v128, 6144
  %vm135 = vcmp.lt.s32.totalorder %v129, 6144
  %vm136 = vcmp.lt.s32.totalorder %v130, 6144
  %vm137 = vcmp.lt.s32.totalorder %v131, 6144
  %vm138 = vcmp.lt.s32.totalorder %v132, 6144
  %v139 = vadd.f32 %v91, 1e-06
  %v140 = vadd.f32 %v92, 1e-06
  %v141 = vadd.f32 %v93, 1e-06
  %v142 = vadd.f32 %v94, 1e-06
  %v143 = vadd.f32 %v95, 1e-06
  %v144 = vadd.f32 %v96, 1e-06
  %v145 = vadd.f32 %v97, 1e-06
  %v146 = vadd.f32 %v98, 1e-06
  %v147 = vadd.f32 %v99, 1e-06
  %v148 = vadd.f32 %v100, 1e-06
  %v149 = vadd.f32 %v101, 1e-06
  %v150 = vadd.f32 %v102, 1e-06
  %v151 = vrcp.pop %v145
  %v152 = vmul.f32 %v139, %v151
  %v153 = vrcp.pop %v146
  %v154 = vmul.f32 %v140, %v153
  %v155 = vrcp.pop %v147
  %v156 = vmul.f32 %v141, %v155
  %v157 = vrcp.pop %v148
  %v158 = vmul.f32 %v142, %v157
  %v159 = vrcp.pop %v149
  %v160 = vmul.f32 %v143, %v159
  %v161 = vrcp.pop %v150
  %v162 = vmul.f32 %v144, %v161
  %v163 = vlog2.pop %v152
  %v164 = vmul.f32 %v163, 0.6931472
  %v165 = vlog2.pop %v154
  %v166 = vmul.f32 %v165, 0.6931472
  %v167 = vlog2.pop %v156
  %v168 = vmul.f32 %v167, 0.6931472
  %v169 = vlog2.pop %v158
  %v170 = vmul.f32 %v169, 0.6931472
  %v171 = vlog2.pop %v160
  %v172 = vmul.f32 %v171, 0.6931472
  %v173 = vlog2.pop %v162
  %v174 = vmul.f32 %v173, 0.6931472
  %v175 = vsel %vm133, %v164, 0.0
  %v176 = vsel %vm134, %v166, 0.0
  %v177 = vsel %vm135, %v168, 0.0
  %v178 = vsel %vm136, %v170, 0.0
  %v179 = vsel %vm137, %v172, 0.0
  %v180 = vsel %vm138, %v174, 0.0
  %v181 = vld [vmem:[#allocation2] sm:$0xff]
  %v182 = vld [vmem:[#allocation2 + $0x8] sm:$0xff]
  %v183 = vld [vmem:[#allocation2 + $0x10] sm:$0xff]
  %v184 = vld [vmem:[#allocation2 + $0x18] sm:$0xff]
  %v185 = vld [vmem:[#allocation2 + $0x20] sm:$0xff]
  %v186 = vld [vmem:[#allocation2 + $0x28] sm:$0xff]
  %v187 = vadd.f32 %v181, %v175
  %v188 = vadd.f32 %v182, %v176
  %v189 = vadd.f32 %v183, %v177
  %v190 = vadd.f32 %v184, %v178
  %v191 = vadd.f32 %v185, %v179
  %v192 = vadd.f32 %v186, %v180
  %193 = vst [vmem:[#allocation2] sm:$0xff] %v187
  %194 = vst [vmem:[#allocation2 + $0x8] sm:$0xff] %v188
  %195 = vst [vmem:[#allocation2 + $0x10] sm:$0xff] %v189
  %196 = vst [vmem:[#allocation2 + $0x18] sm:$0xff] %v190
  %197 = vst [vmem:[#allocation2 + $0x20] sm:$0xff] %v191
  %198 = vst [vmem:[#allocation2 + $0x28] sm:$0xff] %v192
  %v199 = vld [vmem:[#allocation3] sm:$0xff]
  %v200 = vld [vmem:[#allocation3 + $0x8] sm:$0xff]
  %v201 = vld [vmem:[#allocation3 + $0x10] sm:$0xff]
  %v202 = vld [vmem:[#allocation3 + $0x18] sm:$0xff]
  %v203 = vld [vmem:[#allocation3 + $0x20] sm:$0xff]
  %v204 = vld [vmem:[#allocation3 + $0x28] sm:$0xff]
  %v205 = vmul.f32 %v175, %v175
  %v206 = vmul.f32 %v176, %v176
  %v207 = vmul.f32 %v177, %v177
  %v208 = vmul.f32 %v178, %v178
  %v209 = vmul.f32 %v179, %v179
  %v210 = vmul.f32 %v180, %v180
  %v211 = vadd.f32 %v199, %v205
  %v212 = vadd.f32 %v200, %v206
  %v213 = vadd.f32 %v201, %v207
  %v214 = vadd.f32 %v202, %v208
  %v215 = vadd.f32 %v203, %v209
  %v216 = vadd.f32 %v204, %v210
  %217 = vst [vmem:[#allocation3] sm:$0xff] %v211
  %218 = vst [vmem:[#allocation3 + $0x8] sm:$0xff] %v212
  %219 = vst [vmem:[#allocation3 + $0x10] sm:$0xff] %v213
  %220 = vst [vmem:[#allocation3 + $0x18] sm:$0xff] %v214
  %221 = vst [vmem:[#allocation3 + $0x20] sm:$0xff] %v215
  %222 = vst [vmem:[#allocation3 + $0x28] sm:$0xff] %v216
  // Predicated region
  $region14: #{silog_loss.1} parent=0 // pred_check
    %p223 = pneg %p75
  $region15: #{silog_loss.1} parent=0 // pred_check_branch
    %225 = sbr.rel (%p223) target = $region17
  $region16: #{silog_loss.1} parent=0 // pred_region
    %v226 = vld [vmem:[#allocation2] sm:$0xff]
    %v227 = vld [vmem:[#allocation2 + $0x8] sm:$0xff]
    %v228 = vld [vmem:[#allocation2 + $0x10] sm:$0xff]
    %v229 = vld [vmem:[#allocation2 + $0x18] sm:$0xff]
    %v230 = vld [vmem:[#allocation2 + $0x20] sm:$0xff]
    %v231 = vld [vmem:[#allocation2 + $0x28] sm:$0xff]
    %v232 = vadd.f32 %v226, %v227
    %v233 = vadd.f32 %v232, %v228
    %v234 = vadd.f32 %v233, %v229
    %v235 = vadd.f32 %v234, %v230
    %v236 = vadd.f32 %v235, %v231
    %237 = vadd.xlane.f32.xlu0 %v236
    %v238 = vpop.xlane.xlu0 %237
    %v239 = vrot.slane %v238, 4
    %v240 = vadd.f32 %v238, %v239
    %v241 = vrot.slane %v240, 2
    %v242 = vadd.f32 %v240, %v241
    %v243 = vrot.slane %v242, 1
    %v244 = vadd.f32 %v242, %v243
    %s245 = vtos %v244
    %v246 = vld [vmem:[#allocation3] sm:$0xff]
    %v247 = vld [vmem:[#allocation3 + $0x8] sm:$0xff]
    %v248 = vld [vmem:[#allocation3 + $0x10] sm:$0xff]
    %v249 = vld [vmem:[#allocation3 + $0x18] sm:$0xff]
    %v250 = vld [vmem:[#allocation3 + $0x20] sm:$0xff]
    %v251 = vld [vmem:[#allocation3 + $0x28] sm:$0xff]
    %v252 = vadd.f32 %v246, %v247
    %v253 = vadd.f32 %v252, %v248
    %v254 = vadd.f32 %v253, %v249
    %v255 = vadd.f32 %v254, %v250
    %v256 = vadd.f32 %v255, %v251
    %257 = vadd.xlane.f32.xlu0 %v256
    %v258 = vpop.xlane.xlu0 %257
    %v259 = vrot.slane %v258, 4
    %v260 = vadd.f32 %v258, %v259
    %v261 = vrot.slane %v260, 2
    %v262 = vadd.f32 %v260, %v261
    %v263 = vrot.slane %v262, 1
    %v264 = vadd.f32 %v262, %v263
    %s265 = vtos %v264
    %vm266 = vcmp.eq.s32.totalorder %v113, 0
    %vm267 = vcmp.eq.s32.totalorder %v113, 1
    %v268 = vstv %s265
    %v269 = vsel %vm267, %v268, 0.0
    %v270 = vstv %s245
    %v271 = vsel %vm266, %v270, %v269
    %272 = vst [vmem:[%s2] sm:$0xff] %v271
  $region17: #{silog_loss.1} parent=0 // pred_fallthru
    _
  // Predicated region
  $region18: #{silog_loss.1} parent=0 // pred_check
    _
  $region19: #{silog_loss.1} parent=0 // pred_check_branch
    %274 = sbr.rel (0) target = $region21
  $region20: #{silog_loss.1} parent=0 // pred_region
    _
  $region21: #{silog_loss.1} parent=0 // pred_fallthru
    _
  // Predicated region
  $region22: #{silog_loss.1} parent=0 // pred_check
    _
  $region23: #{silog_loss.1} parent=0 // pred_check_branch
    %276 = sbr.rel (0) target = $region25
  $region24: #{silog_loss.1} parent=0 // pred_region
    _
  $region25: #{silog_loss.1} parent=0 // pred_fallthru
    _

</llo_original>
